<compile_context>
chip_gen: v7x
topology: tpu7x:2x2x1
jax: 0.10.0
libtpu: 0.0.40
codegen_flags: <defaults>
</compile_context>

<pallas_src>
import numpy as np
import jax
import jax.numpy as jnp
from jax.experimental import pallas as pl
from jax.experimental.pallas import tpu as pltpu

BN_EPS = 1e-5
BN_SCALE = float(1.0 / np.sqrt(1.0 + BN_EPS))
NEG_FLOOR = -3.0e38          # "no ReLU" floor (max(x, NEG_FLOOR) == x for finite x)
LIN_TILE_PREF = 512          # preferred point-axis tile for the linear kernels
GVA_TILE_PREF = 256          # preferred point-axis tile for the fused GVA kernel
MIN_TILE = 128


# --------------------------------------------------------------------------- #
# small helpers
# --------------------------------------------------------------------------- #
def _round_up(n, m):
    return ((n + m - 1) // m) * m


def _pick_tile(n, pref, min_tile=MIN_TILE):
    # Largest power-of-two tile <= pref that still yields >= 2 grid steps (so both
    # v7x TensorCores get work) while keeping point-axis padding below one tile.
    target = max(min_tile, _round_up(n, min_tile) // 2)
    t = min_tile
    while t * 2 <= min(pref, target):
        t *= 2
    return t


def _pad_rows(x, rows):
    n = x.shape[0]
    if rows == n:
        return x
    zeros = jnp.zeros((rows - n,) + x.shape[1:], x.dtype)
    return jnp.concatenate([x, zeros], axis=0)


# --------------------------------------------------------------------------- #
# Pallas kernel 1: VoxelPooling down projection  Linear(no bias) + BN(eval) + ReLU
# --------------------------------------------------------------------------- #
def _down_kernel(x_ref, w_ref, o_ref):
    o_ref[...] = jnp.maximum(
        jnp.dot(x_ref[...].astype(jnp.bfloat16), w_ref[...],
                preferred_element_type=jnp.float32), 0.0)


def down_projection(x, w_bf16, tile):
    m, cin = x.shape
    cout = w_bf16.shape[1]
    return pl.pallas_call(
        _down_kernel,
        out_shape=jax.ShapeDtypeStruct((m, cout), jnp.float32),
        grid_spec=pltpu.PrefetchScalarGridSpec(
            num_scalar_prefetch=0,
            grid=(m // tile,),
            in_specs=[pl.BlockSpec((tile, cin), lambda i: (i, 0)),
                      pl.BlockSpec((cin, cout), lambda i: (0, 0))],
            out_specs=pl.BlockSpec((tile, cout), lambda i: (i, 0))),
        compiler_params=pltpu.CompilerParams(dimension_semantics=("parallel",)),
    )(x, w_bf16)


# --------------------------------------------------------------------------- #
# Pallas kernel 2: fused fc1+norm1+ReLU -> (q|k|v|pad) projection (ReLU on q,k via
# per-column floor, plain linear for v, zero-pad columns to 4C=128 lanes)
# --------------------------------------------------------------------------- #
def _fc1_qkv_kernel(x_ref, w1_ref, wqkv_ref, bqkv_ref, fqkv_ref, o_ref):
    h = jnp.maximum(jnp.dot(x_ref[...].astype(jnp.bfloat16), w1_ref[...],
                            preferred_element_type=jnp.float32), 0.0)
    y = jnp.dot(h.astype(jnp.bfloat16), wqkv_ref[...],
                preferred_element_type=jnp.float32) + bqkv_ref[...]
    o_ref[...] = jnp.maximum(y, fqkv_ref[...]).astype(o_ref.dtype)


def fc1_qkv_fused(x, w1, wqkv, bqkv, floor, tile):
    m, c = x.shape
    cout = wqkv.shape[1]                                  # 4C (lane-dense, padded)
    return pl.pallas_call(
        _fc1_qkv_kernel,
        out_shape=jax.ShapeDtypeStruct((m, cout), jnp.bfloat16),
        grid_spec=pltpu.PrefetchScalarGridSpec(
            num_scalar_prefetch=0,
            grid=(m // tile,),
            in_specs=[pl.BlockSpec((tile, c), lambda i: (i, 0)),
                      pl.BlockSpec((c, c), lambda i: (0, 0)),
                      pl.BlockSpec((c, cout), lambda i: (0, 0)),
                      pl.BlockSpec((1, cout), lambda i: (0, 0)),
                      pl.BlockSpec((1, cout), lambda i: (0, 0))],
            out_specs=pl.BlockSpec((tile, cout), lambda i: (i, 0))),
        compiler_params=pltpu.CompilerParams(dimension_semantics=("parallel",)),
    )(x, w1, wqkv, bqkv, floor)


# --------------------------------------------------------------------------- #
# Pallas kernel 3: fused GroupedVectorAttention core + fc3/norm3/residual/ReLU
#   positional-bias MLP (block-diag) -> rel/val -> weight-encoding MLP (block-diag,
#   group->channel expand folded) -> softmax(K) -> mask -> grouped weighted sum
#   -> norm2(eval BN)+ReLU -> fc3(+norm3) + residual + ReLU.
#   All big tensors stay 2-D lane-dense (T, K*C); the K axis is handled with static
#   (T, C) lane slices so nothing is ever reshaped to 3-D.
# --------------------------------------------------------------------------- #
def _gva_kernel(kq_ref, vg_ref, pm_ref, idn_ref,
                wp1x_ref, bp1x_ref, wp2x_ref, bp2x_ref,
                we1x_ref, be1x_ref, we2x_ref, be2x_ref,
                wfc3_ref, o_ref):
    c = o_ref.shape[1]
    k = kq_ref.shape[1] // c
    pm = pm_ref[...]                                      # (T, 4K) f32

    # linear_p_bias: Linear(3->C)+BN+ReLU then Linear(C->C), both as block-diagonal
    # matmuls on the lane-dense layout.
    pos = pm[:, :3 * k]                                   # (T, 3K), k-major d-minor
    h = jnp.maximum(
        jnp.dot(pos.astype(jnp.bfloat16), wp1x_ref[...],
                preferred_element_type=jnp.float32) + bp1x_ref[...], 0.0)
    peb = jnp.dot(h.astype(jnp.bfloat16), wp2x_ref[...],
                  preferred_element_type=jnp.float32) + bp2x_ref[...]    # (T, KC)

    # relation_qk = (key_g - q) + peb; weight_encoding: Linear(C->G)+BN+ReLU,
    # Linear(G->G) with the group->channel expand folded in (channel-wide logits).
    rel = (kq_ref[...].astype(jnp.float32) + peb).astype(jnp.bfloat16)
    he = jnp.maximum(
        jnp.dot(rel, we1x_ref[...], preferred_element_type=jnp.float32)
        + be1x_ref[...], 0.0)                             # (T, KG)
    logits = jnp.dot(he.astype(jnp.bfloat16), we2x_ref[...],
                     preferred_element_type=jnp.float32) + be2x_ref[...]  # (T, KC)

    # softmax over the K neighbor blocks (per channel), THEN mask (matches the
    # reference); weighted sum fused so neither the softmax weights nor value+peb
    # are materialized at full (T, K, C) size.
    m = logits[:, :c]
    for j in range(1, k):
        m = jnp.maximum(m, logits[:, j * c:(j + 1) * c])
    denom = jnp.zeros_like(m)
    acc = jnp.zeros_like(m)
    for j in range(k):
        ej = jnp.exp(logits[:, j * c:(j + 1) * c] - m)
        denom = denom + ej
        val_j = (vg_ref[:, j * c:(j + 1) * c].astype(jnp.float32)
                 + peb[:, j * c:(j + 1) * c])
        acc = acc + val_j * (ej * pm[:, 3 * k + j:3 * k + j + 1])
    attn = jnp.maximum(acc * pl.reciprocal(denom, approx=True) * BN_SCALE, 0.0)

    # fc3 (+ folded norm3 scale) + residual + ReLU epilogue.
    y = jnp.dot(attn.astype(jnp.bfloat16), wfc3_ref[...],
                preferred_element_type=jnp.float32)
    o_ref[...] = jnp.maximum(idn_ref[...] + y, 0.0)


def gva_attention(kq, vg, pm, idn, bp, tile):
    m, kc = kq.shape
    c = idn.shape[1]
    pm_w = pm.shape[1]

    def wspec(shp):
        return pl.BlockSpec(shp, lambda i: (0, 0))

    return pl.pallas_call(
        _gva_kernel,
        out_shape=jax.ShapeDtypeStruct((m, c), jnp.float32),
        grid_spec=pltpu.PrefetchScalarGridSpec(
            num_scalar_prefetch=0,
            grid=(m // tile,),
            in_specs=[
                pl.BlockSpec((tile, kc), lambda i: (i, 0)),      # key_g - q (bf16)
                pl.BlockSpec((tile, kc), lambda i: (i, 0)),      # value_g   (bf16)
                pl.BlockSpec((tile, pm_w), lambda i: (i, 0)),    # [pos | mask] f32
                pl.BlockSpec((tile, c), lambda i: (i, 0)),       # residual identity
                wspec(bp["wp1x"].shape), wspec(bp["bp1x"].shape),
                wspec(bp["wp2x"].shape), wspec(bp["bp2x"].shape),
                wspec(bp["we1x"].shape), wspec(bp["be1x"].shape),
                wspec(bp["we2x"].shape), wspec(bp["be2x"].shape),
                wspec(bp["w_fc3"].shape),
            ],
            out_specs=pl.BlockSpec((tile, c), lambda i: (i, 0)),
        ),
        compiler_params=pltpu.CompilerParams(
            dimension_semantics=("parallel",),
            vmem_limit_bytes=32 * 1024 * 1024),
    )(kq, vg, pm, idn,
      bp["wp1x"], bp["bp1x"], bp["wp2x"], bp["bp2x"],
      bp["we1x"], bp["be1x"], bp["we2x"], bp["be2x"], bp["w_fc3"])


# --------------------------------------------------------------------------- #
# host-side parameter folding (BN eval stats, qkv concat+pad, block-diag packing,
# group->channel expand fold, bf16 cast)
# --------------------------------------------------------------------------- #
def prep_block_params(p, c, g, k):
    eye_k = jnp.eye(k, dtype=jnp.float32)
    expand = jnp.repeat(jnp.eye(g, dtype=jnp.float32), c // g, axis=1)   # (G, C)
    wq, bq = p["q"]
    wk, bk = p["k"]
    wv, bv = p["v"]
    zeros_c = jnp.zeros((c,), jnp.float32)
    w_qkv4 = jnp.concatenate(
        [wq * BN_SCALE, wk * BN_SCALE, wv, jnp.zeros((c, c), jnp.float32)], axis=1)
    b_qkv4 = jnp.concatenate([bq * BN_SCALE, bk * BN_SCALE, bv, zeros_c], axis=0)
    floor_qkv4 = jnp.concatenate(
        [jnp.zeros((2 * c,), jnp.float32),
         jnp.full((c,), NEG_FLOOR, jnp.float32), zeros_c], axis=0)
    wp1 = p["p1"][0] * BN_SCALE
    bp1 = p["p1"][1] * BN_SCALE
    wp2, bp2 = p["p2"]
    we1 = p["we1"][0] * BN_SCALE
    be1 = p["we1"][1] * BN_SCALE
    we2c = p["we2"][0] @ expand
    be2c = p["we2"][1] @ expand
    return {
        "w_fc1": (p["fc1"][0] * BN_SCALE).astype(jnp.bfloat16),          # (C, C)
        "w_qkv4": w_qkv4.astype(jnp.bfloat16),                           # (C, 4C)
        "b_qkv4": b_qkv4.reshape(1, 4 * c),
        "floor_qkv4": floor_qkv4.reshape(1, 4 * c),
        "wp1x": jnp.kron(eye_k, wp1).astype(jnp.bfloat16),               # (3K, KC)
        "bp1x": jnp.tile(bp1, k).reshape(1, k * c),
        "wp2x": jnp.kron(eye_k, wp2).astype(jnp.bfloat16),               # (KC, KC)
        "bp2x": jnp.tile(bp2, k).reshape(1, k * c),
        "we1x": jnp.kron(eye_k, we1).astype(jnp.bfloat16),               # (KC, KG)
        "be1x": jnp.tile(be1, k).reshape(1, k * g),
        "we2x": jnp.kron(eye_k, we2c).astype(jnp.bfloat16),              # (KG, KC)
        "be2x": jnp.tile(be2c, k).reshape(1, k * c),
        "w_fc3": (p["fc3"][0] * BN_SCALE).astype(jnp.bfloat16),          # (C, C)
    }


# --------------------------------------------------------------------------- #
# JAX / numpy glue (data-dependent indexing: knn gather, knn, voxel pooling)
# --------------------------------------------------------------------------- #
def offset2batch_np(offset, n):
    batch = np.zeros(n, np.int64)
    prev = 0
    for b, o in enumerate(offset):
        batch[prev:int(o)] = b
        prev = int(o)
    return batch


def knn_jax(coord, offset_np, k):
    # TODO(synk): dense O(N^2) distances; replace with a batched/banded KNN for large N.
    n = coord.shape[0]
    batch = jnp.asarray(offset2batch_np(offset_np, n))
    d2 = jnp.sum((coord[:, None, :] - coord[None, :, :]) ** 2, axis=-1)
    d2 = jnp.where(batch[:, None] == batch[None, :], d2, jnp.inf)
    _, idx = jax.lax.top_k(-d2, k)
    return idx.astype(jnp.int32)


def voxel_pool(coord, feat_embed, offset_np, grid_size):
    # TODO(synk): voxel_grid + torch.unique yield a data-dependent cluster count;
    # cluster assignment is computed host-side (numpy), reductions run in JAX.
    coord_np = np.asarray(jax.device_get(coord), dtype=np.float64)
    n = coord_np.shape[0]
    batch = offset2batch_np(offset_np, n)
    nb = int(batch.max()) + 1
    start = np.stack([coord_np[batch == b].min(axis=0) for b in range(nb)], 0)
    vox = np.floor((coord_np - start[batch]) / grid_size).astype(np.int64)
    keys = np.concatenate([batch[:, None], vox], axis=1)
    _, cluster, counts = np.unique(keys, axis=0, return_inverse=True,
                                   return_counts=True)
    cluster = cluster.reshape(-1)
    sorted_idx = np.argsort(cluster, kind="stable")
    idx_ptr = np.concatenate([np.zeros(1, np.int64), np.cumsum(counts)])
    new_batch = batch[idx_ptr[:-1]]
    new_offset = np.cumsum(np.bincount(new_batch, minlength=nb)).astype(np.int64)
    nc = len(counts)
    sidx = jnp.asarray(sorted_idx)
    seg_ids = jnp.asarray(np.repeat(np.arange(nc), counts))
    counts_j = jnp.asarray(counts, jnp.float32)
    coord_p = jax.ops.segment_sum(coord[sidx], seg_ids, num_segments=nc) \
        / counts_j[:, None]                                  # reduce='mean'
    feat_p = jax.ops.segment_max(feat_embed[sidx], seg_ids, num_segments=nc)
    cluster_info = {"cluster": jnp.asarray(cluster), "indices": sidx,
                    "idx_ptr": jnp.asarray(idx_ptr)}
    return coord_p, feat_p, new_offset, new_batch, cluster_info


# --------------------------------------------------------------------------- #
# module forward (KnnTransformer / PointTransformerSequence / PointEncoder)
# --------------------------------------------------------------------------- #
def knn_transformer_block(bp, feat, idx, pm, k, c, lin_tile, gva_tile):
    mp = feat.shape[0]
    identity = feat
    # fc1 -> norm1 -> ReLU -> fused q|k|v projection (single pallas_call; q/k ReLU via
    # per-column floor, plain linear for v, zero-padded to 4C=128 lanes).
    qkv = fc1_qkv_fused(feat, bp["w_fc1"], bp["w_qkv4"], bp["b_qkv4"],
                        bp["floor_qkv4"], lin_tile)           # (mp, 4C) bf16
    q, key, value = qkv[:, :c], qkv[:, c:2 * c], qkv[:, 2 * c:3 * c]
    # knn gather stays in XLA (data-dependent); kq/vg stored lane-dense (mp, K*C) bf16
    # and `key_g - q` is folded into the gather so the kernel needs no (N,1,C) operand.
    kq = (key[idx] - q[:, None, :]).reshape(mp, k * c)
    # TODO(synk): the source gathers `value` from the already-gathered `key` (raises in
    # PyTorch); we implement the intended semantics (gather the linear_v output).
    vg = value[idx].reshape(mp, k * c)
    # fused GVA (pos MLP, weight encoding, softmax, mask, weighted sum, norm2+ReLU)
    # + fc3/norm3 + residual + ReLU epilogue.
    return gva_attention(kq, vg, pm, identity, bp, gva_tile)


def point_encoder_forward(params, coord, feat, offset, *, groups, grid_size,
                          neighbors):
    c_embed = params["down_fc"][0].shape[1]
    # ---- VoxelPooling (down): fc (no bias) + BN(eval) + ReLU in one Pallas linear ----
    n0 = feat.shape[0]
    tile0 = _pick_tile(n0, LIN_TILE_PREF)
    pad0 = _round_up(n0, tile0)
    w_down = (params["down_fc"][0] * BN_SCALE).astype(jnp.bfloat16)
    feat_e = down_projection(_pad_rows(feat.astype(jnp.float32), pad0),
                             w_down, tile0)[:n0]
    offset_np = np.asarray(jax.device_get(offset)).astype(np.int64)
    coord_p, feat_p, new_offset, new_batch, cluster_info = voxel_pool(
        coord, feat_e, offset_np, grid_size)

    # ---- PointTransformerSequence ----
    npts = int(feat_p.shape[0])
    lin_tile = _pick_tile(npts, LIN_TILE_PREF)
    gva_tile = min(GVA_TILE_PREF, lin_tile)      # gva_tile divides lin_tile (pow2)
    mp = _round_up(npts, lin_tile)
    k = int(min(neighbors, np.bincount(new_batch).min()))
    knn_idx = knn_jax(coord_p, new_offset, k)                 # (npts, K), all valid

    # pad the point axis ONCE for the whole block sequence (unpad once at the end)
    f = _pad_rows(feat_p, mp)
    coord_pad = _pad_rows(coord_p.astype(jnp.float32), mp)
    idx_pad = _pad_rows(knn_idx, mp)                          # pad rows gather row 0
    mask = (idx_pad >= 0).astype(jnp.float32)                 # == sign(idx + 1)
    pos = (coord_pad[idx_pad] - coord_pad[:, None, :]) * mask[:, :, None]
    pm = jnp.concatenate([pos.reshape(mp, 3 * k), mask], axis=1)   # (mp, 4K) f32

    for p_blk in params["blocks"]:
        bp = prep_block_params(p_blk, c_embed, groups, k)
        f = knn_transformer_block(bp, f, idx_pad, pm, k, c_embed,
                                  lin_tile, gva_tile)

    points = (coord_p, f[:npts], jnp.asarray(new_offset, jnp.int32))
    return points, cluster_info


# --------------------------------------------------------------------------- #
# deterministic parameter init
# --------------------------------------------------------------------------- #
def init_params(key, in_channels, embed_channels, groups, depth):
    keys = iter(jax.random.split(key, 64))

    def lin(cin, cout, bias=True):
        w = jax.random.normal(next(keys), (cin, cout), jnp.float32) / np.sqrt(cin)
        b = (jax.random.normal(next(keys), (cout,), jnp.float32) * 0.02
             if bias else jnp.zeros((cout,), jnp.float32))
        return w, b

    params = {"down_fc": lin(in_channels, embed_channels, bias=False), "blocks": []}
    for _ in range(depth):
        params["blocks"].append({
            "fc1": lin(embed_channels, embed_channels, bias=False),
            "fc3": lin(embed_channels, embed_channels, bias=False),
            "q": lin(embed_channels, embed_channels, True),
            "k": lin(embed_channels, embed_channels, True),
            "v": lin(embed_channels, embed_channels, True),
            "p1": lin(3, embed_channels, True),
            "p2": lin(embed_channels, embed_channels, True),
            "we1": lin(embed_channels, groups, True),
            "we2": lin(groups, groups, True),
        })
    return params


# --------------------------------------------------------------------------- #
if __name__ == "__main__":
    depth, in_channels, embed_channels, groups = 2, 4, 32, 4
    grid_size, neighbors = 0.30, 8
    n_per_batch = 48

    key = jax.random.PRNGKey(0)
    kc, kf, kp = jax.random.split(key, 3)
    coord = jax.random.uniform(kc, (2 * n_per_batch, 3), jnp.float32)
    feat = jax.random.normal(kf, (2 * n_per_batch, in_channels), jnp.float32)
    offset = jnp.asarray([n_per_batch, 2 * n_per_batch], jnp.int32)

    params = init_params(kp, in_channels, embed_channels, groups, depth)
    (coord_p, feat_p, offset_p), cluster = point_encoder_forward(
        params, coord, feat, offset,
        groups=groups, grid_size=grid_size, neighbors=neighbors)

    jax.block_until_ready(feat_p)
    jax.block_until_ready(coord_p)
    assert bool(jnp.all(jnp.isfinite(feat_p)))
    assert bool(jnp.all(jnp.isfinite(coord_p)))
    print("KERNEL_OK")
</pallas_src>

<mosaic_0001>
module attributes {stable_mosaic.version = 11 : i64} {
  func.func @_down_kernel(%arg0: i32, %arg1: memref<128x4xf32, #tpu.memory_space<vmem>>, %arg2: memref<4x32xbf16, #tpu.memory_space<vmem>>, %arg3: memref<128x32xf32, #tpu.memory_space<vmem>>) attributes {dimension_semantics = [#tpu.dimension_semantics<parallel>], iteration_bounds = array<i64: 1>, scalar_prefetch = 0 : i64, scratch_operands = 0 : i64, tpu.core_type = #tpu.core_type<tc>, window_params = [{transform_indices = @transform_0, window_bounds = array<i64: 128, 4>}, {pipeline_mode = #tpu.pipeline_mode<synchronous>, transform_indices = @transform_1, window_bounds = array<i64: 4, 32>}, {transform_indices = @transform_2, window_bounds = array<i64: 128, 32>}]} {
    %c0 = arith.constant 0 : index
    %c0_0 = arith.constant 0 : index
    %0 = vector.load %arg1[%c0, %c0_0] : memref<128x4xf32, #tpu.memory_space<vmem>>, vector<128x4xf32>
    %1 = arith.truncf %0 : vector<128x4xf32> to vector<128x4xbf16>
    %c0_1 = arith.constant 0 : index
    %c0_2 = arith.constant 0 : index
    %2 = vector.load %arg2[%c0_1, %c0_2] : memref<4x32xbf16, #tpu.memory_space<vmem>>, vector<4x32xbf16>
    %cst = arith.constant dense<0.000000e+00> : vector<128x32xf32>
    %3 = tpu.matmul %1, %2, %cst {dimension_numbers = #tpu.dot_dimension_numbers<[1], [0], [0], [1], [0, 0, 1, 1], [], []>} : vector<128x4xbf16>, vector<4x32xbf16>, vector<128x32xf32> -> vector<128x32xf32>
    %cst_3 = arith.constant 0.000000e+00 : f32
    %4 = vector.broadcast %cst_3 : f32 to vector<128x32xf32>
    %5 = arith.maximumf %3, %4 : vector<128x32xf32>
    %c0_4 = arith.constant 0 : index
    %c0_5 = arith.constant 0 : index
    %6 = vector.load %arg3[%c0_4, %c0_5] : memref<128x32xf32, #tpu.memory_space<vmem>>, vector<128x32xf32>
    tpu.vector_store %arg3[%c0_4, %c0_5], %5 {strides = array<i32>} : memref<128x32xf32, #tpu.memory_space<vmem>>, vector<128x32xf32>,
    return
  }
  func.func @transform_0(%arg0: i32) -> (i32, i32) {
    %c0_i32 = arith.constant 0 : i32
    %c0_i32_0 = arith.constant 0 : i32
    return %arg0, %c0_i32 : i32, i32
  }
  func.func @transform_1(%arg0: i32) -> (i32, i32) {
    %c0_i32 = arith.constant 0 : i32
    %c0_i32_0 = arith.constant 0 : i32
    %c0_i32_1 = arith.constant 0 : i32
    return %c0_i32, %c0_i32_0 : i32, i32
  }
  func.func @transform_2(%arg0: i32) -> (i32, i32) {
    %c0_i32 = arith.constant 0 : i32
    %c0_i32_0 = arith.constant 0 : i32
    return %arg0, %c0_i32 : i32, i32
  }
}

</mosaic_0001>

<llo_original>
// kernel: tpu_custom_call.1
$region0: #{tpu_custom_call.1}
  #allocation0 [shape = 'u32[]', space=smem, size = 0x4, offset = 0x4, fixed_abs, tag = 'smem constant byte address 0x4 - core index']
  #allocation1 [shape = 'u32[144,128]{1,0:T(1,128)}', space=vmem, size = 0x12000, scoped, tag = 'internal scratch']
  %s0 = inlined_call_operand.vmem [shape: f32[128,4], index: 0, kind: input, shape index: {}]
  %s1 = inlined_call_operand.vmem [shape: bf16[4,32], index: 1, kind: input, shape index: {}]
  %s2 = inlined_call_operand.vmem [shape: f32[128,32], index: 2, kind: output, shape index: {}]
  %s3 = sld [smem:[#allocation0]]
  $region18: #{tpu_custom_call.1} parent=0
    _
  %s5 = ssub.s32 1, %s3
  %s6 = scalar_select 0, %s5, %s3
  // Predicated region
  $region2: #{tpu_custom_call.1} parent=0 // pred_check
    _
  $region3: #{tpu_custom_call.1} parent=0 // pred_check_branch
    %8 = sbr.rel (0) target = $region5
  $region4: #{tpu_custom_call.1} parent=0 // pred_region
    _
  $region5: #{tpu_custom_call.1} parent=0 // pred_fallthru
    _
  // Predicated region
  $region6: #{tpu_custom_call.1} parent=0 // pred_check
    _
  $region7: #{tpu_custom_call.1} parent=0 // pred_check_branch
    %10 = sbr.rel (0) target = $region9
  $region8: #{tpu_custom_call.1} parent=0 // pred_region
    _
  $region9: #{tpu_custom_call.1} parent=0 // pred_fallthru
    _
  %v12 = vld [vmem:[%s0] sm:$0xff]
  %v13 = vld [vmem:[%s0 + $0x8] sm:$0xff]
  %v14 = vld [vmem:[%s0 + $0x10] sm:$0xff]
  %v15 = vld [vmem:[%s0 + $0x18] sm:$0xff]
  %v16 = vld [vmem:[%s0 + $0x20] sm:$0xff]
  %v17 = vld [vmem:[%s0 + $0x28] sm:$0xff]
  %v18 = vld [vmem:[%s0 + $0x30] sm:$0xff]
  %v19 = vld [vmem:[%s0 + $0x38] sm:$0xff]
  %v20 = vld [vmem:[%s0 + $0x40] sm:$0xff]
  %v21 = vld [vmem:[%s0 + $0x48] sm:$0xff]
  %v22 = vld [vmem:[%s0 + $0x50] sm:$0xff]
  %v23 = vld [vmem:[%s0 + $0x58] sm:$0xff]
  %v24 = vld [vmem:[%s0 + $0x60] sm:$0xff]
  %v25 = vld [vmem:[%s0 + $0x68] sm:$0xff]
  %v26 = vld [vmem:[%s0 + $0x70] sm:$0xff]
  %v27 = vld [vmem:[%s0 + $0x78] sm:$0xff]
  %v28 = vpack.c.bf16 %v13, %v12
  %v29 = vpack.c.bf16 %v15, %v14
  %v30 = vpack.c.bf16 %v17, %v16
  %v31 = vpack.c.bf16 %v19, %v18
  %v32 = vpack.c.bf16 %v21, %v20
  %v33 = vpack.c.bf16 %v23, %v22
  %v34 = vpack.c.bf16 %v25, %v24
  %v35 = vpack.c.bf16 %v27, %v26
  %v36 = vld [vmem:[%s1] sm:$0x3]
  %vm37 = vcmask 31744
  %v39 = vsel %vm37, %v28, 0
  %v42 = vsel %vm37, %v29, 0
  %v45 = vsel %vm37, %v30, 0
  %v48 = vsel %vm37, %v31, 0
  %v51 = vsel %vm37, %v32, 0
  %v54 = vsel %vm37, %v33, 0
  %v57 = vsel %vm37, %v34, 0
  %v60 = vsel %vm37, %v35, 0
  %vm62 = vcmask 1041408
  %v64 = vsel %vm62, %v36, 0
  %66 = vmatprep.subr.bf16.mxu0 0
  %67 = vmatpush1.bf16.msra.mxu0 %v64
  %68 = vmatprep.subr.bf16.mxu0 0
  %69 = vmatpush1.bf16.msra.mxu0 0
  %70 = vmatprep.subr.bf16.mxu0 0
  %71 = vmatpush1.bf16.msra.mxu0 0
  %72 = vmatprep.subr.bf16.mxu0 0
  %73 = vmatpush1.bf16.msra.mxu0 0
  %74 = vmatprep.subr.bf16.mxu0 0
  %75 = vmatpush1.bf16.msra.mxu0 0
  %76 = vmatprep.subr.bf16.mxu0 0
  %77 = vmatpush1.bf16.msra.mxu0 0
  %78 = vmatprep.subr.bf16.mxu0 0
  %79 = vmatpush1.bf16.msra.mxu0 0
  %80 = vmatprep.subr.bf16.mxu0 0
  %81 = vmatpush1.bf16.msra.mxu0 0
  %82 = vmatprep.subr.bf16.mxu0 0
  %83 = vmatpush1.bf16.msra.mxu0 0
  %84 = vmatprep.subr.bf16.mxu0 0
  %85 = vmatpush1.bf16.msra.mxu0 0
  %86 = vmatprep.subr.bf16.mxu0 0
  %87 = vmatpush1.bf16.msra.mxu0 0
  %88 = vmatprep.subr.bf16.mxu0 0
  %89 = vmatpush1.bf16.msra.mxu0 0
  %90 = vmatprep.subr.bf16.mxu0 0
  %91 = vmatpush1.bf16.msra.mxu0 0
  %92 = vmatprep.subr.bf16.mxu0 0
  %93 = vmatpush1.bf16.msra.mxu0 0
  %94 = vmatprep.subr.bf16.mxu0 0
  %95 = vmatpush1.bf16.msra.mxu0 0
  %96 = vmatprep.subr.bf16.mxu0 0
  %97 = vmatpush1.bf16.msra.mxu0 0
  %98 = vmatprep.mubr.bf16.mxu0 0
  %99 = vmatmul.mubr.bf16.gmra.mrb[0].mxu0 %v39
  %v100 = vpop.f32.mrb[0].mxu0
  %v101 = vadd.f32 0.0, %v100
  %v102 = vpop.f32.mrb[0].mxu0
  %v103 = vpop.f32.mrb[0].mxu0
  %v104 = vadd.f32 0.0, %v103
  %v105 = vpop.f32.mrb[0].mxu0
  %106 = vmatprep.mubr.bf16.mxu0 0
  %107 = vmatmul.mubr.bf16.gmra.mrb[0].mxu0 %v42
  %v108 = vpop.f32.mrb[0].mxu0
  %v109 = vadd.f32 0.0, %v108
  %v110 = vpop.f32.mrb[0].mxu0
  %v111 = vpop.f32.mrb[0].mxu0
  %v112 = vadd.f32 0.0, %v111
  %v113 = vpop.f32.mrb[0].mxu0
  %114 = vmatprep.mubr.bf16.mxu0 0
  %115 = vmatmul.mubr.bf16.gmra.mrb[0].mxu0 %v45
  %v116 = vpop.f32.mrb[0].mxu0
  %v117 = vadd.f32 0.0, %v116
  %v118 = vpop.f32.mrb[0].mxu0
  %v119 = vpop.f32.mrb[0].mxu0
  %v120 = vadd.f32 0.0, %v119
  %v121 = vpop.f32.mrb[0].mxu0
  %122 = vmatprep.mubr.bf16.mxu0 0
  %123 = vmatmul.mubr.bf16.gmra.mrb[0].mxu0 %v48
  %v124 = vpop.f32.mrb[0].mxu0
  %v125 = vadd.f32 0.0, %v124
  %v126 = vpop.f32.mrb[0].mxu0
  %v127 = vpop.f32.mrb[0].mxu0
  %v128 = vadd.f32 0.0, %v127
  %v129 = vpop.f32.mrb[0].mxu0
  %130 = vmatprep.mubr.bf16.mxu0 0
  %131 = vmatmul.mubr.bf16.gmra.mrb[0].mxu0 %v51
  %v132 = vpop.f32.mrb[0].mxu0
  %v133 = vadd.f32 0.0, %v132
  %v134 = vpop.f32.mrb[0].mxu0
  %v135 = vpop.f32.mrb[0].mxu0
  %v136 = vadd.f32 0.0, %v135
  %v137 = vpop.f32.mrb[0].mxu0
  %138 = vmatprep.mubr.bf16.mxu0 0
  %139 = vmatmul.mubr.bf16.gmra.mrb[0].mxu0 %v54
  %v140 = vpop.f32.mrb[0].mxu0
  %v141 = vadd.f32 0.0, %v140
  %v142 = vpop.f32.mrb[0].mxu0
  %v143 = vpop.f32.mrb[0].mxu0
  %v144 = vadd.f32 0.0, %v143
  %v145 = vpop.f32.mrb[0].mxu0
  %146 = vmatprep.mubr.bf16.mxu0 0
  %147 = vmatmul.mubr.bf16.gmra.mrb[0].mxu0 %v57
  %v148 = vpop.f32.mrb[0].mxu0
  %v149 = vadd.f32 0.0, %v148
  %v150 = vpop.f32.mrb[0].mxu0
  %v151 = vpop.f32.mrb[0].mxu0
  %v152 = vadd.f32 0.0, %v151
  %v153 = vpop.f32.mrb[0].mxu0
  %154 = vmatprep.mubr.bf16.mxu0 0
  %155 = vmatmul.mubr.bf16.gmra.mrb[0].mxu0 %v60
  %v156 = vpop.f32.mrb[0].mxu0
  %v157 = vadd.f32 0.0, %v156
  %v158 = vpop.f32.mrb[0].mxu0
  %v159 = vpop.f32.mrb[0].mxu0
  %v160 = vadd.f32 0.0, %v159
  %v161 = vpop.f32.mrb[0].mxu0
  %162 = vdwg.mxu0
  %v163 = vmax.f32 %v101, 0.0
  %v164 = vmax.f32 %v104, 0.0
  %v165 = vmax.f32 %v109, 0.0
  %v166 = vmax.f32 %v112, 0.0
  %v167 = vmax.f32 %v117, 0.0
  %v168 = vmax.f32 %v120, 0.0
  %v169 = vmax.f32 %v125, 0.0
  %v170 = vmax.f32 %v128, 0.0
  %v171 = vmax.f32 %v133, 0.0
  %v172 = vmax.f32 %v136, 0.0
  %v173 = vmax.f32 %v141, 0.0
  %v174 = vmax.f32 %v144, 0.0
  %v175 = vmax.f32 %v149, 0.0
  %v176 = vmax.f32 %v152, 0.0
  %v177 = vmax.f32 %v157, 0.0
  %v178 = vmax.f32 %v160, 0.0
  %vm179 = vcmask 261120
  %180 = vst.msk [vmem:[%s2] sm:$0xff] %vm179, %v163
  %181 = vst.msk [vmem:[%s2 + $0x8] sm:$0xff] %vm179, %v164
  %182 = vst.msk [vmem:[%s2 + $0x10] sm:$0xff] %vm179, %v165
  %183 = vst.msk [vmem:[%s2 + $0x18] sm:$0xff] %vm179, %v166
  %184 = vst.msk [vmem:[%s2 + $0x20] sm:$0xff] %vm179, %v167
  %185 = vst.msk [vmem:[%s2 + $0x28] sm:$0xff] %vm179, %v168
  %186 = vst.msk [vmem:[%s2 + $0x30] sm:$0xff] %vm179, %v169
  %187 = vst.msk [vmem:[%s2 + $0x38] sm:$0xff] %vm179, %v170
  %188 = vst.msk [vmem:[%s2 + $0x40] sm:$0xff] %vm179, %v171
  %189 = vst.msk [vmem:[%s2 + $0x48] sm:$0xff] %vm179, %v172
  %190 = vst.msk [vmem:[%s2 + $0x50] sm:$0xff] %vm179, %v173
  %191 = vst.msk [vmem:[%s2 + $0x58] sm:$0xff] %vm179, %v174
  %192 = vst.msk [vmem:[%s2 + $0x60] sm:$0xff] %vm179, %v175
  %193 = vst.msk [vmem:[%s2 + $0x68] sm:$0xff] %vm179, %v176
  %194 = vst.msk [vmem:[%s2 + $0x70] sm:$0xff] %vm179, %v177
  %195 = vst.msk [vmem:[%s2 + $0x78] sm:$0xff] %vm179, %v178
  // Predicated region
  $region10: #{tpu_custom_call.1} parent=0 // pred_check
    _
  $region11: #{tpu_custom_call.1} parent=0 // pred_check_branch
    %197 = sbr.rel (0) target = $region13
  $region12: #{tpu_custom_call.1} parent=0 // pred_region
    _
  $region13: #{tpu_custom_call.1} parent=0 // pred_fallthru
    _
  // Predicated region
  $region14: #{tpu_custom_call.1} parent=0 // pred_check
    _
  $region15: #{tpu_custom_call.1} parent=0 // pred_check_branch
    %199 = sbr.rel (0) target = $region17
  $region16: #{tpu_custom_call.1} parent=0 // pred_region
    _
  $region17: #{tpu_custom_call.1} parent=0 // pred_fallthru
    _

</llo_original>
